<compile_context>
chip_gen: v5e
topology: v5e:2x2
jax: 0.10.0
libtpu: 0.0.40
codegen_flags: <defaults>
</compile_context>

<pallas_src>
import functools
import math

import jax
import jax.numpy as jnp
from jax.experimental import pallas as pl
from jax.experimental.pallas import tpu as pltpu


def _bistable_kernel(alpha_ref, x_ref, o_ref, *, d):
    """out = alpha * where(lane % d == 0, x^3 - x, x); compute in f32."""
    alpha = alpha_ref[0]                                   # scalar f32 (SMEM)
    x = x_ref[...].astype(jnp.float32)                     # (TB, W) in vregs
    col = jax.lax.broadcasted_iota(jnp.int32, x.shape, dimension=1)
    if d & (d - 1) == 0:                                   # power of two -> cheap AND
        is_coord0 = (col & (d - 1)) == 0
    else:
        is_coord0 = (col % d) == 0
    cubic = x * x * x - x
    o_ref[...] = (alpha * jnp.where(is_coord0, cubic, x)).astype(o_ref.dtype)


def _choose_tb(rows, row_bytes, block_bytes):
    """Rows per block: ~block_bytes worth, multiple of 8, >=2 grid steps if possible."""
    tb = max(8, (block_bytes // max(row_bytes, 1)) // 8 * 8)
    if rows > 8:
        # Cap at ~half the rows (rounded up to a multiple of 8) so the grid has
        # at least 2 programs and "parallel" can shard across v7x's 2 TCs.
        half = ((rows + 1) // 2 + 7) // 8 * 8
        tb = min(tb, half)
    else:
        tb = rows            # single block equal to the full array dim (legal)
    return tb


def _run_pallas(xv, alpha_arr, *, d, block_bytes):
    rows, width = xv.shape
    tb = _choose_tb(rows, width * xv.dtype.itemsize, block_bytes)
    grid = (pl.cdiv(rows, tb),)
    kernel = functools.partial(_bistable_kernel, d=d)
    return pl.pallas_call(
        kernel,
        out_shape=jax.ShapeDtypeStruct((rows, width), xv.dtype),
        grid=grid,
        in_specs=[
            pl.BlockSpec(memory_space=pltpu.MemorySpace.SMEM),  # alpha scalar
            pl.BlockSpec((tb, width), lambda i: (i, 0)),        # x tiles
        ],
        out_specs=pl.BlockSpec((tb, width), lambda i: (i, 0)),
        compiler_params=pltpu.CompilerParams(
            dimension_semantics=("parallel",),
        ),
    )(alpha_arr, xv)


def _bistable_jnp(x, alpha):
    """Fused XLA path for tiny inputs (also the pure-JAX reference body)."""
    xf = x.astype(jnp.float32)
    alpha = jnp.asarray(alpha, jnp.float32)
    out = alpha * xf
    out = out.at[:, 0].set(alpha * (xf[:, 0] ** 3 - xf[:, 0]))
    return out.astype(x.dtype)


def learnable_nd_bistable_forward(t, x, alpha, *,
                                  block_bytes=2 * 1024 * 1024,
                                  min_pallas_bytes=1 << 18):
    """Pallas equivalent of LearnableNDBistableSystem.forward(t, x).

    `t` is accepted for API fidelity but unused (autonomous system).
    A 1-D input is promoted to (1, dim) like torch; output is (B, dim) in the
    input dtype.
    """
    del t  # autonomous system
    x = jnp.asarray(x)
    if x.ndim == 1:
        x = x[None, :]
    B, D = x.shape
    alpha_arr = jnp.asarray(alpha, jnp.float32).reshape(1)

    # Tiny problems: pallas launch + DMA setup dominates; fused XLA wins.
    if B * D * x.dtype.itemsize < min_pallas_bytes:
        return _bistable_jnp(x, alpha_arr)

    # Lane-dense repack: view (B, D) row-major as (R, W) with W a multiple of
    # 128 (free reshape of a contiguous array), when B allows it.
    if D < 128:
        group = math.lcm(D, 128) // D        # batch rows per packed row
        if B % group == 0:
            W = group * D
            out = _run_pallas(x.reshape(B // group, W), alpha_arr,
                              d=D, block_bytes=block_bytes)
            return out.reshape(B, D)

    # Fallback: (TB, D) batch tiles; ragged last block handled by Pallas
    # OOB semantics (elementwise op => harmless).
    return _run_pallas(x, alpha_arr, d=D, block_bytes=block_bytes)


def bistable_reference(x, alpha):
    """Pure-JAX reference mirroring the PyTorch module exactly."""
    x = jnp.asarray(x)
    if x.ndim == 1:
        x = x[None, :]
    return _bistable_jnp(x, alpha)


if __name__ == "__main__":
    key = jax.random.PRNGKey(0)
    kx, kb, kc = jax.random.split(key, 3)
    t = jnp.zeros(())   # unused by the autonomous system

    # --- small case, force the Pallas path (fallback (TB, D) layout) ---------
    BATCH, DIM = 4, 8
    x = jax.random.normal(kx, (BATCH, DIM), jnp.float32)
    alpha = -1.0
    out = jax.block_until_ready(
        learnable_nd_bistable_forward(t, x, alpha, min_pallas_bytes=0))
    ref = bistable_reference(x, alpha)
    assert out.shape == (BATCH, DIM) and out.dtype == x.dtype
    assert jnp.allclose(out, ref, rtol=1e-5, atol=1e-6), "kernel/reference mismatch"

    # --- learnable alpha path (alpha_init = 0.7) ------------------------------
    alpha2 = jnp.float32(0.7)
    out2 = jax.block_until_ready(
        learnable_nd_bistable_forward(t, x, alpha2, min_pallas_bytes=0))
    assert jnp.allclose(out2, bistable_reference(x, alpha2), rtol=1e-5, atol=1e-6)

    # --- 1-D input path: torch unsqueezes and returns (1, dim) ----------------
    out1 = jax.block_until_ready(
        learnable_nd_bistable_forward(t, x[0], alpha, min_pallas_bytes=0))
    assert out1.shape == (1, DIM)
    assert jnp.allclose(out1, ref[:1], rtol=1e-5, atol=1e-6)

    # --- lane-dense packed path (B % (128/D) == 0): (1024, 8) -> (64, 128) ----
    xp = jax.random.normal(kb, (1024, DIM), jnp.float32)
    outp = jax.block_until_ready(
        learnable_nd_bistable_forward(t, xp, alpha, min_pallas_bytes=0))
    assert jnp.allclose(outp, bistable_reference(xp, alpha), rtol=1e-5, atol=1e-6)

    # --- ragged-grid fallback (B=1000, last block partially OOB) --------------
    xr = jax.random.normal(kc, (1000, DIM), jnp.float32)
    outr = jax.block_until_ready(
        learnable_nd_bistable_forward(t, xr, alpha, min_pallas_bytes=0))
    assert outr.shape == (1000, DIM)
    assert jnp.allclose(outr, bistable_reference(xr, alpha), rtol=1e-5, atol=1e-6)

    # --- default size gate: tiny input takes the fused-XLA path ---------------
    outg = jax.block_until_ready(learnable_nd_bistable_forward(t, x, alpha))
    assert jnp.allclose(outg, ref, rtol=1e-5, atol=1e-6)

    # TODO(synk): compute_trajectory / StochasticWrapperSDE (odeint / torchsde
    # integration loops) are host-level control flow around forward(), not part of it.

    print("KERNEL_OK")
</pallas_src>

<mosaic_0001>
module attributes {stable_mosaic.version = 11 : i64} {
  func.func @_bistable_kernel(%arg0: i32, %arg1: memref<1xf32, #tpu.memory_space<smem>>, %arg2: memref<4x8xf32, #tpu.memory_space<vmem>>, %arg3: memref<4x8xf32, #tpu.memory_space<vmem>>) attributes {dimension_semantics = [#tpu.dimension_semantics<parallel>], iteration_bounds = array<i64: 1>, scalar_prefetch = 0 : i64, scratch_operands = 0 : i64, tpu.core_type = #tpu.core_type<tc>, window_params = [{transform_indices = @transform_0, window_bounds = array<i64: 1>}, {transform_indices = @transform_1, window_bounds = array<i64: 4, 8>}, {transform_indices = @transform_2, window_bounds = array<i64: 4, 8>}]} {
    %c0 = arith.constant 0 : index
    %0 = memref.load %arg1[%c0] : memref<1xf32, #tpu.memory_space<smem>>
    %c0_0 = arith.constant 0 : index
    %c0_1 = arith.constant 0 : index
    %1 = vector.load %arg2[%c0_0, %c0_1] : memref<4x8xf32, #tpu.memory_space<vmem>>, vector<4x8xf32>
    %2 = tpu.iota {dimensions = array<i32: 1>} : vector<4x8xi32>
    %c7_i32 = arith.constant 7 : i32
    %3 = vector.broadcast %c7_i32 : i32 to vector<4x8xi32>
    %4 = arith.andi %2, %3 : vector<4x8xi32>
    %c0_i32 = arith.constant 0 : i32
    %5 = vector.broadcast %c0_i32 : i32 to vector<4x8xi32>
    %6 = arith.cmpi eq, %4, %5 : vector<4x8xi32>
    %7 = arith.mulf %1, %1 : vector<4x8xf32>
    %8 = arith.mulf %7, %1 : vector<4x8xf32>
    %9 = arith.subf %8, %1 : vector<4x8xf32>
    %10 = arith.select %6, %9, %1 : vector<4x8xi1>, vector<4x8xf32>
    %11 = vector.broadcast %0 : f32 to vector<4x8xf32>
    %12 = arith.mulf %11, %10 : vector<4x8xf32>
    %c0_2 = arith.constant 0 : index
    %c0_3 = arith.constant 0 : index
    %13 = vector.load %arg3[%c0_2, %c0_3] : memref<4x8xf32, #tpu.memory_space<vmem>>, vector<4x8xf32>
    tpu.vector_store %arg3[%c0_2, %c0_3], %12 {strides = array<i32>} : memref<4x8xf32, #tpu.memory_space<vmem>>, vector<4x8xf32>,
    return
  }
  func.func @transform_0(%arg0: i32) -> i32 {
    %c0_i32 = arith.constant 0 : i32
    %c0_i32_0 = arith.constant 0 : i32
    return %c0_i32 : i32
  }
  func.func @transform_1(%arg0: i32) -> (i32, i32) {
    %c0_i32 = arith.constant 0 : i32
    %c0_i32_0 = arith.constant 0 : i32
    return %arg0, %c0_i32 : i32, i32
  }
  func.func @transform_2(%arg0: i32) -> (i32, i32) {
    %c0_i32 = arith.constant 0 : i32
    %c0_i32_0 = arith.constant 0 : i32
    return %arg0, %c0_i32 : i32, i32
  }
}

</mosaic_0001>

<llo_original>
// kernel: tpu_custom_call.1
$region0: #{tpu_custom_call.1}
  #allocation0 [shape = 'u32[]', space=smem, size = 0x4, offset = 0x4, fixed_abs, tag = 'smem constant byte address 0x4 - core index']
  #allocation1 [shape = 'u32[72,128]{1,0:T(1,128)}', space=vmem, size = 0x9000, scoped, tag = 'internal scratch']
  #allocation2 [shape = 'f32[1]{0:T(128)S(6)}', space=smem, size = 0x200, scoped, tag = 'scoped memory for tpu_custom_call.1']
  %s0 = inlined_call_operand.<no memory space> [shape: f32[1], index: 0, kind: input, shape index: {}]
  %s1 = inlined_call_operand.hbm [shape: f32[4,8], index: 1, kind: input, shape index: {}]
  %s2 = inlined_call_operand.hbm [shape: f32[4,8], index: 2, kind: output, shape index: {}]
  %s3 = sld [smem:[#allocation0]]
  $region22: #{tpu_custom_call.1} parent=0
    _
  %s5 = ssub.s32 1, %s3
  %s6 = scalar_select 0, %s5, %s3
  %7 = sst [smem:[#allocation2]] %s0
  $region1: #{tpu_custom_call.1} parent=0
    #allocation3 [shape = 'u8[2048]{0}', space=vmem, size = 0x800, scoped, tag = 'input window, operand 1, single buffered']
    #allocation4 [shape = 's32[1]{0}', space=sflag, size = 0x4, scoped, tag = 'scoped memory for tpu_custom_call.1']
    #allocation5 [shape = 's32[1]{0}', space=sflag, size = 0x4, scoped, tag = 'scoped memory for tpu_custom_call.1']
    #allocation6 [shape = 'u8[2048]{0}', space=vmem, size = 0x800, scoped, tag = 'output window, operand 0, single buffered']
    %8 = vsyncpa [#allocation4], 0
    %9 = vsyncpa [#allocation5], 0
    // Predicated region
    $region2: #{tpu_custom_call.1} parent=1 // pred_check
      _
    $region3: #{tpu_custom_call.1} parent=1 // pred_check_branch
      %11 = sbr.rel (0) target = $region5
    $region4: #{tpu_custom_call.1} parent=1 // pred_region
      _
    $region5: #{tpu_custom_call.1} parent=1 // pred_fallthru
      _
    // Predicated region
    $region6: #{tpu_custom_call.1} parent=1 // pred_check
      _
    $region7: #{tpu_custom_call.1} parent=1 // pred_check_branch
      %13 = sbr.rel (0) target = $region9
    $region8: #{tpu_custom_call.1} parent=1 // pred_region
      %15 = vsyncadd [#allocation4], 0
      %s17 = sshll.u32 %s1, 4
      %s18 = int_to_ptr.hbm [resolvable:$true] %s17
      %s19 = sshll.u32 [#allocation3], 4
      %s20 = int_to_ptr.vmem [resolvable:$true] %s19
      %22 = dma.hbm_to_vmem [thread:$0]  %s18, 64, %s20, [#allocation4]
    $region9: #{tpu_custom_call.1} parent=1 // pred_fallthru
      _
    // Predicated region
    $region10: #{tpu_custom_call.1} parent=1 // pred_check
      _
    $region11: #{tpu_custom_call.1} parent=1 // pred_check_branch
      %24 = sbr.rel (0) target = $region13
    $region12: #{tpu_custom_call.1} parent=1 // pred_region
      %26 = dma.done [#allocation4], 64
    $region13: #{tpu_custom_call.1} parent=1 // pred_fallthru
      _
    %s27 = sld [smem:[#allocation2]]
    %v28 = vld [vmem:[#allocation3] sm:$0xf]
    %v29 = vlaneseq
    %v30 = vand.u32 %v29, 127
    %v31 = vand.u32 %v30, 7
    %vm32 = vcmp.eq.s32.totalorder %v31, 0
    %v33 = vmul.f32 %v28, %v28
    %v34 = vmul.f32 %v33, %v28
    %v35 = vsub.f32 %v34, %v28
    %v36 = vsel %vm32, %v35, %v28
    %v37 = vstv %s27
    %v38 = vmul.f32 %v37, %v36
    %vm39 = vcmask 60416
    %40 = vst.msk [vmem:[#allocation6] sm:$0xf] %vm39, %v38
    // Predicated region
    $region14: #{tpu_custom_call.1} parent=1 // pred_check
      _
    $region15: #{tpu_custom_call.1} parent=1 // pred_check_branch
      %42 = sbr.rel (0) target = $region17
    $region16: #{tpu_custom_call.1} parent=1 // pred_region
      %44 = vsyncadd [#allocation5], 0
      %s46 = sshll.u32 [#allocation6], 4
      %s47 = int_to_ptr.vmem [resolvable:$true] %s46
      %s48 = sshll.u32 %s2, 4
      %s49 = int_to_ptr.hbm [resolvable:$true] %s48
      %51 = dma.vmem_to_hbm [thread:$0]  %s47, 64, %s49, [#allocation5]
    $region17: #{tpu_custom_call.1} parent=1 // pred_fallthru
      _
    // Predicated region
    $region18: #{tpu_custom_call.1} parent=1 // pred_check
      _
    $region19: #{tpu_custom_call.1} parent=1 // pred_check_branch
      %53 = sbr.rel (0) target = $region21
    $region20: #{tpu_custom_call.1} parent=1 // pred_region
      %55 = dma.done [#allocation5], 64
    $region21: #{tpu_custom_call.1} parent=1 // pred_fallthru
      _
    %56 = vsyncpa [#allocation4], 1
    %57 = vsyncpa [#allocation5], 1

</llo_original>
